<compile_context>
chip_gen: v7x
topology: tpu7x:2x2x1
jax: 0.10.0
libtpu: 0.0.40
codegen_flags: <defaults>
</compile_context>

<pallas_src>
import jax
import jax.numpy as jnp
from jax.experimental import pallas as pl
from jax.experimental.pallas import tpu as pltpu


def _conv_softmax_kernel(xcol_ref, w_ref, b_ref, o_ref):
    # xcol_ref: (K, M)   im2col patches, K = 9*Cin, M = N*H*W   (compute dtype)
    # w_ref   : (Cout, K)                                        (compute dtype)
    # b_ref   : (Cout, 1) float32
    # o_ref   : (N, Cout, H*W)
    n_batch, _, hw = o_ref.shape

    # Single fused MXU contraction, f32 accumulation. acc: (Cout, M), M on lanes.
    acc = jnp.dot(w_ref[...], xcol_ref[...],
                  preferred_element_type=jnp.float32)
    acc = acc + b_ref[...]                                   # lane broadcast, once

    # Softmax over the channel axis (sublanes) == nn.Softmax(dim=1) on NCHW.
    m = jnp.max(acc, axis=0, keepdims=True)                  # (1, M)  cross-sublane (XLU)
    e = jnp.exp(acc - m)                                     # EUP
    s = jnp.sum(e, axis=0, keepdims=True)                    # (1, M)
    out = e * pl.reciprocal(s, approx=True)                  # EUP recip (rows sum to ~1)

    # Per-batch, lane-aligned stores (hw = 256 here -> unmasked 128-lane stores).
    for n in range(n_batch):                                 # static unroll, N is small
        o_ref[n, :, :] = out[:, n * hw:(n + 1) * hw].astype(o_ref.dtype)


def csblock_forward(x_nchw, weight_oihw, bias, *, stride=1,
                    compute_dtype=jnp.bfloat16):
    """Conv2d(Cin, Cout, 3, stride=1, padding=1, bias=True) -> Softmax over channels.

    x_nchw: (N, Cin, H, W) f32.  weight_oihw: (Cout, Cin, 3, 3).  bias: (Cout,).
    Returns (N, Cout, H, W) in x's dtype.
    """
    assert stride == 1, "stride=1 only (module default)"
    N, Cin, H, W = x_nchw.shape
    Cout = weight_oihw.shape[0]
    HW = H * W
    M = N * HW
    K = 9 * Cin

    # ---- wrapper glue: zero-pad + im2col (layout plumbing), weights to a 2-D tile ----
    x_pad = jnp.pad(x_nchw, ((0, 0), (0, 0), (1, 1), (1, 1)))          # (N,Cin,H+2,W+2)
    taps = [x_pad[:, :, ky:ky + H, kx:kx + W]
            for ky in range(3) for kx in range(3)]                     # 9 x (N,Cin,H,W)
    x_col = jnp.stack(taps, axis=1).reshape(N, K, HW)                  # (N, 9*Cin, HW)
    x_col = x_col.transpose(1, 0, 2).reshape(K, M)                     # (K, N*HW)
    w2 = weight_oihw.transpose(0, 2, 3, 1).reshape(Cout, K)            # (Cout, 9*Cin)

    x_col = x_col.astype(compute_dtype)                                # bf16 to the MXU
    w2 = w2.astype(compute_dtype)
    b2 = bias.reshape(Cout, 1).astype(jnp.float32)

    out = pl.pallas_call(
        _conv_softmax_kernel,
        out_shape=jax.ShapeDtypeStruct((N, Cout, HW), x_nchw.dtype),
        grid_spec=pltpu.PrefetchScalarGridSpec(
            num_scalar_prefetch=0,
            grid=(1,),   # batch folded into the matmul M dimension -> one step
            in_specs=[
                pl.BlockSpec((K, M), lambda i: (0, 0)),
                pl.BlockSpec((Cout, K), lambda i: (0, 0)),
                pl.BlockSpec((Cout, 1), lambda i: (0, 0)),
            ],
            out_specs=pl.BlockSpec((N, Cout, HW), lambda i: (0, 0, 0)),
        ),
        compiler_params=pltpu.CompilerParams(
            dimension_semantics=("arbitrary",),
            vmem_limit_bytes=32 * 1024 * 1024,  # explicit; comfortable on v7x's 64 MiB VMEM
        ),
    )(x_col, w2, b2)

    # Pure reshape (no transpose) back to PyTorch's NCHW convention.
    return out.reshape(N, Cout, H, W)


def _reference_forward(x_nchw, weight_oihw, bias):
    """Pure-JAX f32 reference (lax conv + softmax) for correctness check."""
    y = jax.lax.conv_general_dilated(
        x_nchw, weight_oihw,
        window_strides=(1, 1), padding=((1, 1), (1, 1)),
        dimension_numbers=("NCHW", "OIHW", "NCHW"))
    y = y + bias.reshape(1, -1, 1, 1)
    return jax.nn.softmax(y, axis=1)


if __name__ == "__main__":
    key = jax.random.PRNGKey(0)
    k_x, k_w, k_b = jax.random.split(key, 3)

    N, Cin, Cout, H, W = 2, 4, 8, 16, 16

    x = jax.random.normal(k_x, (N, Cin, H, W), dtype=jnp.float32)
    # deterministic synthetic parameters (same shapes as nn.Conv2d(in_ch, out_ch, 3))
    fan_in = Cin * 3 * 3
    bound = 1.0 / (fan_in ** 0.5)
    weight = jax.random.uniform(k_w, (Cout, Cin, 3, 3), jnp.float32, -bound, bound)
    bias = jax.random.uniform(k_b, (Cout,), jnp.float32, -bound, bound)

    out = csblock_forward(x, weight, bias)
    out = jax.block_until_ready(out)

    ref = jax.block_until_ready(_reference_forward(x, weight, bias))
    assert out.shape == (N, Cout, H, W)
    # bf16 MXU operands + approximate reciprocal in the softmax give ~1e-3-class
    # error (softmax rows sum to ~1 rather than exactly 1).
    assert jnp.allclose(out, ref, atol=2e-2, rtol=2e-2), "mismatch vs reference"

    print("KERNEL_OK")
</pallas_src>

<mosaic_0001>
module attributes {stable_mosaic.version = 11 : i64} {
  func.func @_conv_softmax_kernel(%arg0: i32, %arg1: memref<36x512xbf16, #tpu.memory_space<vmem>>, %arg2: memref<8x36xbf16, #tpu.memory_space<vmem>>, %arg3: memref<8x1xf32, #tpu.memory_space<vmem>>, %arg4: memref<2x8x256xf32, #tpu.memory_space<vmem>>) attributes {dimension_semantics = [#tpu.dimension_semantics<arbitrary>], iteration_bounds = array<i64: 1>, scalar_prefetch = 0 : i64, scratch_operands = 0 : i64, tpu.core_type = #tpu.core_type<tc>, window_params = [{pipeline_mode = #tpu.pipeline_mode<synchronous>, transform_indices = @transform_0, window_bounds = array<i64: 36, 512>}, {pipeline_mode = #tpu.pipeline_mode<synchronous>, transform_indices = @transform_1, window_bounds = array<i64: 8, 36>}, {pipeline_mode = #tpu.pipeline_mode<synchronous>, transform_indices = @transform_2, window_bounds = array<i64: 8, 1>}, {pipeline_mode = #tpu.pipeline_mode<synchronous>, transform_indices = @transform_3, window_bounds = array<i64: 2, 8, 256>}]} {
    %c0 = arith.constant 0 : index
    %c0_0 = arith.constant 0 : index
    %0 = vector.load %arg2[%c0, %c0_0] : memref<8x36xbf16, #tpu.memory_space<vmem>>, vector<8x36xbf16>
    %c0_1 = arith.constant 0 : index
    %c0_2 = arith.constant 0 : index
    %1 = vector.load %arg1[%c0_1, %c0_2] : memref<36x512xbf16, #tpu.memory_space<vmem>>, vector<36x512xbf16>
    %cst = arith.constant dense<0.000000e+00> : vector<8x512xf32>
    %2 = tpu.matmul %0, %1, %cst {dimension_numbers = #tpu.dot_dimension_numbers<[1], [0], [0], [1], [0, 0, 1, 1], [], []>} : vector<8x36xbf16>, vector<36x512xbf16>, vector<8x512xf32> -> vector<8x512xf32>
    %c0_3 = arith.constant 0 : index
    %c0_4 = arith.constant 0 : index
    %3 = vector.load %arg3[%c0_3, %c0_4] : memref<8x1xf32, #tpu.memory_space<vmem>>, vector<8x1xf32>
    %4 = vector.broadcast %3 : vector<8x1xf32> to vector<8x512xf32>
    %5 = arith.addf %2, %4 : vector<8x512xf32>
    %cst_5 = arith.constant dense<0xFF800000> : vector<512xf32>
    %6 = vector.multi_reduction <maximumf>, %5, %cst_5 [0] : vector<8x512xf32> to vector<512xf32>
    %7 = vector.shape_cast %6 : vector<512xf32> to vector<1x512xf32>
    %8 = vector.broadcast %7 : vector<1x512xf32> to vector<8x512xf32>
    %9 = arith.subf %5, %8 : vector<8x512xf32>
    %10 = math.exp %9 : vector<8x512xf32>
    %cst_6 = arith.constant dense<0.000000e+00> : vector<512xf32>
    %11 = vector.multi_reduction <add>, %10, %cst_6 [0] : vector<8x512xf32> to vector<512xf32>
    %12 = vector.shape_cast %11 : vector<512xf32> to vector<1x512xf32>
    %13 = tpu.reciprocal %12 {approx = true} : vector<1x512xf32> -> vector<1x512xf32>
    %14 = vector.broadcast %13 : vector<1x512xf32> to vector<8x512xf32>
    %15 = arith.mulf %10, %14 : vector<8x512xf32>
    %16 = vector.extract_strided_slice %15 {offsets = [0, 0], sizes = [8, 256], strides = [1, 1]} : vector<8x512xf32> to vector<8x256xf32>
    %c0_7 = arith.constant 0 : index
    %c0_8 = arith.constant 0 : index
    %c0_9 = arith.constant 0 : index
    %17 = vector.load %arg4[%c0_7, %c0_8, %c0_9] : memref<2x8x256xf32, #tpu.memory_space<vmem>>, vector<1x8x256xf32>
    %18 = vector.shape_cast %17 : vector<1x8x256xf32> to vector<8x256xf32>
    %19 = vector.shape_cast %16 : vector<8x256xf32> to vector<1x8x256xf32>
    tpu.vector_store %arg4[%c0_7, %c0_8, %c0_9], %19 {strides = array<i32>} : memref<2x8x256xf32, #tpu.memory_space<vmem>>, vector<1x8x256xf32>,
    %20 = vector.extract_strided_slice %15 {offsets = [0, 256], sizes = [8, 256], strides = [1, 1]} : vector<8x512xf32> to vector<8x256xf32>
    %c1 = arith.constant 1 : index
    %c0_10 = arith.constant 0 : index
    %c0_11 = arith.constant 0 : index
    %21 = vector.load %arg4[%c1, %c0_10, %c0_11] : memref<2x8x256xf32, #tpu.memory_space<vmem>>, vector<1x8x256xf32>
    %22 = vector.shape_cast %21 : vector<1x8x256xf32> to vector<8x256xf32>
    %23 = vector.shape_cast %20 : vector<8x256xf32> to vector<1x8x256xf32>
    tpu.vector_store %arg4[%c1, %c0_10, %c0_11], %23 {strides = array<i32>} : memref<2x8x256xf32, #tpu.memory_space<vmem>>, vector<1x8x256xf32>,
    return
  }
  func.func @transform_0(%arg0: i32) -> (i32, i32) {
    %c0_i32 = arith.constant 0 : i32
    %c0_i32_0 = arith.constant 0 : i32
    %c0_i32_1 = arith.constant 0 : i32
    return %c0_i32, %c0_i32_0 : i32, i32
  }
  func.func @transform_1(%arg0: i32) -> (i32, i32) {
    %c0_i32 = arith.constant 0 : i32
    %c0_i32_0 = arith.constant 0 : i32
    %c0_i32_1 = arith.constant 0 : i32
    return %c0_i32, %c0_i32_0 : i32, i32
  }
  func.func @transform_2(%arg0: i32) -> (i32, i32) {
    %c0_i32 = arith.constant 0 : i32
    %c0_i32_0 = arith.constant 0 : i32
    %c0_i32_1 = arith.constant 0 : i32
    return %c0_i32, %c0_i32_0 : i32, i32
  }
  func.func @transform_3(%arg0: i32) -> (i32, i32, i32) {
    %c0_i32 = arith.constant 0 : i32
    %c0_i32_0 = arith.constant 0 : i32
    %c0_i32_1 = arith.constant 0 : i32
    %c0_i32_2 = arith.constant 0 : i32
    return %c0_i32, %c0_i32_0, %c0_i32_1 : i32, i32, i32
  }
}

</mosaic_0001>

<llo_original>
// kernel: tpu_custom_call.1
$region0: #{tpu_custom_call.1}
  #allocation0 [shape = 'u32[]', space=smem, size = 0x4, offset = 0x4, fixed_abs, tag = 'smem constant byte address 0x4 - core index']
  #allocation1 [shape = 'u32[144,128]{1,0:T(1,128)}', space=vmem, size = 0x12000, scoped, tag = 'internal scratch']
  %s0 = inlined_call_operand.hbm [shape: bf16[36,512], index: 0, kind: input, shape index: {}]
  %s1 = inlined_call_operand.vmem [shape: bf16[8,36], index: 1, kind: input, shape index: {}]
  %s2 = inlined_call_operand.vmem [shape: f32[8,1], index: 2, kind: input, shape index: {}]
  %s3 = inlined_call_operand.hbm [shape: f32[2,8,256], index: 3, kind: output, shape index: {}]
  %s4 = sld [smem:[#allocation0]]
  $region26: #{tpu_custom_call.1} parent=0
    _
  %s6 = ssub.s32 1, %s4
  %s7 = scalar_select 0, %s6, %s4
  $region1: #{tpu_custom_call.1} parent=0
    #allocation2 [shape = 'u8[40960]{0}', space=vmem, size = 0xa000, scoped, tag = 'input window, operand 0, single buffered']
    #allocation3 [shape = 's32[1]{0}', space=sflag, size = 0x4, scoped, tag = 'scoped memory for tpu_custom_call.1']
    #allocation4 [shape = 's32[1]{0}', space=sflag, size = 0x4, scoped, tag = 'scoped memory for tpu_custom_call.1']
    #allocation5 [shape = 'u8[16384]{0}', space=vmem, size = 0x4000, scoped, tag = 'output window, operand 0, single buffered']
    %8 = vsyncpa [#allocation3], 0
    %9 = vsyncpa [#allocation4], 0
    // Predicated region
    $region2: #{tpu_custom_call.1} parent=1 // pred_check
      _
    $region3: #{tpu_custom_call.1} parent=1 // pred_check_branch
      %11 = sbr.rel (0) target = $region5
    $region4: #{tpu_custom_call.1} parent=1 // pred_region
      %s13 = ssub.s32 1280, 1280
      %14 = vsyncadd [#allocation3], %s13
      %s15 = sshll.u32 [#allocation2], 4
      %s16 = int_to_ptr.vmem [resolvable:$true] %s15
      %21 = dma.hbm_to_vmem [thread:$0]  %s0, 1280, %s16, [#allocation3], 256, 256, 16
    $region5: #{tpu_custom_call.1} parent=1 // pred_fallthru
      _
    // Predicated region
    $region6: #{tpu_custom_call.1} parent=1 // pred_check
      _
    $region7: #{tpu_custom_call.1} parent=1 // pred_check_branch
      %23 = sbr.rel (0) target = $region9
    $region8: #{tpu_custom_call.1} parent=1 // pred_region
      _
    $region9: #{tpu_custom_call.1} parent=1 // pred_fallthru
      _
    // Predicated region
    $region10: #{tpu_custom_call.1} parent=1 // pred_check
      _
    $region11: #{tpu_custom_call.1} parent=1 // pred_check_branch
      %25 = sbr.rel (0) target = $region13
    $region12: #{tpu_custom_call.1} parent=1 // pred_region
      _
    $region13: #{tpu_custom_call.1} parent=1 // pred_fallthru
      _
    // Predicated region
    $region14: #{tpu_custom_call.1} parent=1 // pred_check
      _
    $region15: #{tpu_custom_call.1} parent=1 // pred_check_branch
      %27 = sbr.rel (0) target = $region17
    $region16: #{tpu_custom_call.1} parent=1 // pred_region
      %28 = dma.done [#allocation3], 1280
    $region17: #{tpu_custom_call.1} parent=1 // pred_fallthru
      _
    %v30 = vld [vmem:[%s1] sm:$0xf]
    %v31 = vld [vmem:[#allocation2] sm:$0xff]
    %v32 = vld [vmem:[#allocation2 + $0x8] sm:$0xff]
    %v33 = vld [vmem:[#allocation2 + $0x10] sm:$0xff]
    %v34 = vld [vmem:[#allocation2 + $0x18] sm:$0xff]
    %v35 = vld [vmem:[#allocation2 + $0x20] sm:$0xff]
    %v36 = vld [vmem:[#allocation2 + $0x28] sm:$0xff]
    %v37 = vld [vmem:[#allocation2 + $0x30] sm:$0xff]
    %v38 = vld [vmem:[#allocation2 + $0x38] sm:$0xff]
    %v39 = vld [vmem:[#allocation2 + $0x40] sm:$0x33]
    %v40 = vld [vmem:[#allocation2 + $0x48] sm:$0x33]
    %v41 = vld [vmem:[%s2] sm:$0xff]
    %43 = vset.pattern.permute.xlu0 0
    %44 = vperm.xlu0 %43, %v41
    %v45 = vpop.permute.xlu0 %44
    %v57 = vunpack.c.l.b16 %v31
    %v58 = vunpack.c.h.b16 %v31
    %v59 = vunpack.c.l.b16 %v32
    %v60 = vunpack.c.h.b16 %v32
    %v61 = vunpack.c.l.b16 %v33
    %v62 = vunpack.c.h.b16 %v33
    %v63 = vunpack.c.l.b16 %v34
    %v64 = vunpack.c.h.b16 %v34
    %v65 = vunpack.c.l.b16 %v35
    %v66 = vunpack.c.h.b16 %v35
    %v67 = vunpack.c.l.b16 %v36
    %v68 = vunpack.c.h.b16 %v36
    %v69 = vunpack.c.l.b16 %v37
    %v70 = vunpack.c.h.b16 %v37
    %v71 = vunpack.c.l.b16 %v38
    %v72 = vunpack.c.h.b16 %v38
    %v73 = vunpack.c.l.b16 %v39
    %v74 = vunpack.c.h.b16 %v39
    %v75 = vunpack.c.l.b16 %v40
    %v76 = vunpack.c.h.b16 %v40
    %v77 = vpack.c.b16 %v61, %v57
    %v78 = vpack.c.b16 %v62, %v58
    %v79 = vpack.c.b16 %v63, %v59
    %v80 = vpack.c.b16 %v64, %v60
    %v81 = vpack.c.b16 %v69, %v65
    %v82 = vpack.c.b16 %v70, %v66
    %v83 = vpack.c.b16 %v71, %v67
    %v84 = vpack.c.b16 %v72, %v68
    %v85 = vpack.c.b16 %v73, %v73
    %v86 = vpack.c.b16 %v74, %v74
    %v87 = vpack.c.b16 %v75, %v75
    %v88 = vpack.c.b16 %v76, %v76
    %vm97 = vcmask 293888
    %v99 = vsel %vm97, %v30, 0
    %vm101 = vcmask 1041408
    %v103 = vsel %vm101, %v85, 0
    %v106 = vsel %vm101, %v86, 0
    %v109 = vsel %vm101, %v87, 0
    %v112 = vsel %vm101, %v88, 0
    %114 = vmatprep.subr.bf16.mxu0 %v78
    %115 = vmatpush1.bf16.msra.mxu0 %v77
    %116 = vmatprep.subr.bf16.mxu0 %v82
    %117 = vmatpush1.bf16.msra.mxu0 %v81
    %118 = vmatprep.subr.bf16.mxu0 %v106
    %119 = vmatpush1.bf16.msra.mxu0 %v103
    %120 = vmatprep.subr.bf16.mxu0 0
    %121 = vmatpush1.bf16.msra.mxu0 0
    %122 = vmatprep.subr.bf16.mxu0 0
    %123 = vmatpush1.bf16.msra.mxu0 0
    %124 = vmatprep.subr.bf16.mxu0 0
    %125 = vmatpush1.bf16.msra.mxu0 0
    %126 = vmatprep.subr.bf16.mxu0 0
    %127 = vmatpush1.bf16.msra.mxu0 0
    %128 = vmatprep.subr.bf16.mxu0 0
    %129 = vmatpush1.bf16.msra.mxu0 0
    %130 = vmatprep.subr.bf16.mxu0 0
    %131 = vmatpush1.bf16.msra.mxu0 0
    %132 = vmatprep.subr.bf16.mxu0 0
    %133 = vmatpush1.bf16.msra.mxu0 0
    %134 = vmatprep.subr.bf16.mxu0 0
    %135 = vmatpush1.bf16.msra.mxu0 0
    %136 = vmatprep.subr.bf16.mxu0 0
    %137 = vmatpush1.bf16.msra.mxu0 0
    %138 = vmatprep.subr.bf16.mxu0 0
    %139 = vmatpush1.bf16.msra.mxu0 0
    %140 = vmatprep.subr.bf16.mxu0 0
    %141 = vmatpush1.bf16.msra.mxu0 0
    %142 = vmatprep.subr.bf16.mxu0 0
    %143 = vmatpush1.bf16.msra.mxu0 0
    %144 = vmatprep.subr.bf16.mxu0 0
    %145 = vmatpush1.bf16.msra.mxu0 0
    %146 = vmatprep.mubr.bf16.mxu0 0
    %147 = vmatmul.mubr.bf16.gmra.mrb[0].mxu0 %v99
    %v148 = vpop.f32.mrb[0].mxu0
    %v149 = vadd.f32 %v45, %v148
    %v150 = vpop.f32.mrb[0].mxu0
    %v151 = vadd.f32 %v45, %v150
    %v152 = vpop.f32.mrb[0].mxu0
    %v153 = vpop.f32.mrb[0].mxu0
    %154 = vdwg.mxu0
    %155 = vmatprep.subr.bf16.mxu0 %v80
    %156 = vmatpush1.bf16.msra.mxu0 %v79
    %157 = vmatprep.subr.bf16.mxu0 %v84
    %158 = vmatpush1.bf16.msra.mxu0 %v83
    %159 = vmatprep.subr.bf16.mxu0 %v112
    %160 = vmatpush1.bf16.msra.mxu0 %v109
    %161 = vmatprep.subr.bf16.mxu0 0
    %162 = vmatpush1.bf16.msra.mxu0 0
    %163 = vmatprep.subr.bf16.mxu0 0
    %164 = vmatpush1.bf16.msra.mxu0 0
    %165 = vmatprep.subr.bf16.mxu0 0
    %166 = vmatpush1.bf16.msra.mxu0 0
    %167 = vmatprep.subr.bf16.mxu0 0
    %168 = vmatpush1.bf16.msra.mxu0 0
    %169 = vmatprep.subr.bf16.mxu0 0
    %170 = vmatpush1.bf16.msra.mxu0 0
    %171 = vmatprep.subr.bf16.mxu0 0
    %172 = vmatpush1.bf16.msra.mxu0 0
    %173 = vmatprep.subr.bf16.mxu0 0
    %174 = vmatpush1.bf16.msra.mxu0 0
    %175 = vmatprep.subr.bf16.mxu0 0
    %176 = vmatpush1.bf16.msra.mxu0 0
    %177 = vmatprep.subr.bf16.mxu0 0
    %178 = vmatpush1.bf16.msra.mxu0 0
    %179 = vmatprep.subr.bf16.mxu0 0
    %180 = vmatpush1.bf16.msra.mxu0 0
    %181 = vmatprep.subr.bf16.mxu0 0
    %182 = vmatpush1.bf16.msra.mxu0 0
    %183 = vmatprep.subr.bf16.mxu0 0
    %184 = vmatpush1.bf16.msra.mxu0 0
    %185 = vmatprep.subr.bf16.mxu0 0
    %186 = vmatpush1.bf16.msra.mxu0 0
    %187 = vmatprep.mubr.bf16.mxu0 0
    %188 = vmatmul.mubr.bf16.gmra.mrb[0].mxu0 %v99
    %v189 = vpop.f32.mrb[0].mxu0
    %v190 = vadd.f32 %v45, %v189
    %v191 = vpop.f32.mrb[0].mxu0
    %v192 = vadd.f32 %v45, %v191
    %v193 = vpop.f32.mrb[0].mxu0
    %v194 = vpop.f32.mrb[0].mxu0
    %195 = vdwg.mxu0
    %v196 = vrot.slane %v149, 4
    %v197 = vmax.f32 %v149, %v196
    %v198 = vrot.slane %v197, 2
    %v199 = vmax.f32 %v197, %v198
    %v200 = vrot.slane %v199, 1
    %v201 = vmax.f32 %v199, %v200
    %v202 = vrot.slane %v151, 4
    %v203 = vmax.f32 %v151, %v202
    %v204 = vrot.slane %v203, 2
    %v205 = vmax.f32 %v203, %v204
    %v206 = vrot.slane %v205, 1
    %v207 = vmax.f32 %v205, %v206
    %v208 = vrot.slane %v190, 4
    %v209 = vmax.f32 %v190, %v208
    %v210 = vrot.slane %v209, 2
    %v211 = vmax.f32 %v209, %v210
    %v212 = vrot.slane %v211, 1
    %v213 = vmax.f32 %v211, %v212
    %v214 = vrot.slane %v192, 4
    %v215 = vmax.f32 %v192, %v214
    %v216 = vrot.slane %v215, 2
    %v217 = vmax.f32 %v215, %v216
    %v218 = vrot.slane %v217, 1
    %v219 = vmax.f32 %v217, %v218
    %v220 = vsub.f32 %v149, %v201
    %v221 = vsub.f32 %v151, %v207
    %v222 = vsub.f32 %v190, %v213
    %v223 = vsub.f32 %v192, %v219
    %v224 = vmul.f32 %v220, 1.442695
    %v225 = vpow.pop %v224
    %v226 = vmul.f32 %v221, 1.442695
    %v227 = vpow.pop %v226
    %v228 = vmul.f32 %v222, 1.442695
    %v229 = vpow.pop %v228
    %v230 = vmul.f32 %v223, 1.442695
    %v231 = vpow.pop %v230
    %v232 = vrot.slane %v225, 4
    %v233 = vadd.f32 %v225, %v232
    %v234 = vrot.slane %v233, 2
    %v235 = vadd.f32 %v233, %v234
    %v236 = vrot.slane %v235, 1
    %v237 = vadd.f32 %v235, %v236
    %v238 = vrot.slane %v227, 4
    %v239 = vadd.f32 %v227, %v238
    %v240 = vrot.slane %v239, 2
    %v241 = vadd.f32 %v239, %v240
    %v242 = vrot.slane %v241, 1
    %v243 = vadd.f32 %v241, %v242
    %v244 = vrot.slane %v229, 4
    %v245 = vadd.f32 %v229, %v244
    %v246 = vrot.slane %v245, 2
    %v247 = vadd.f32 %v245, %v246
    %v248 = vrot.slane %v247, 1
    %v249 = vadd.f32 %v247, %v248
    %v250 = vrot.slane %v231, 4
    %v251 = vadd.f32 %v231, %v250
    %v252 = vrot.slane %v251, 2
    %v253 = vadd.f32 %v251, %v252
    %v254 = vrot.slane %v253, 1
    %v255 = vadd.f32 %v253, %v254
    %v256 = vrcp.pop %v237
    %v257 = vrcp.pop %v243
    %v258 = vrcp.pop %v249
    %v259 = vrcp.pop %v255
    %v260 = vmul.f32 %v225, %v256
    %v261 = vmul.f32 %v227, %v257
    %v262 = vmul.f32 %v229, %v258
    %v263 = vmul.f32 %v231, %v259
    %264 = vst [vmem:[#allocation5] sm:$0xff] %v260
    %265 = vst [vmem:[#allocation5 + $0x8] sm:$0xff] %v261
    %s266 = scalar_lea.vmem [#allocation5], 16
    %267 = vst [vmem:[%s266] sm:$0xff] %v262
    %268 = vst [vmem:[%s266 + $0x8] sm:$0xff] %v263
    // Predicated region
    $region18: #{tpu_custom_call.1} parent=1 // pred_check
      _
    $region19: #{tpu_custom_call.1} parent=1 // pred_check_branch
      %270 = sbr.rel (0) target = $region21
    $region20: #{tpu_custom_call.1} parent=1 // pred_region
      %s272 = ssub.s32 512, 512
      %273 = vsyncadd [#allocation4], %s272
      %s274 = sshll.u32 [#allocation5], 4
      %s275 = int_to_ptr.vmem [resolvable:$true] %s274
      %280 = dma.vmem_to_hbm [thread:$0]  %s275, 512, %s3, [#allocation4], 256, 256, 16
    $region21: #{tpu_custom_call.1} parent=1 // pred_fallthru
      _
    // Predicated region
    $region22: #{tpu_custom_call.1} parent=1 // pred_check
      _
    $region23: #{tpu_custom_call.1} parent=1 // pred_check_branch
      %282 = sbr.rel (0) target = $region25
    $region24: #{tpu_custom_call.1} parent=1 // pred_region
      %283 = dma.done [#allocation4], 512
    $region25: #{tpu_custom_call.1} parent=1 // pred_fallthru
      _
    %284 = vsyncpa [#allocation3], 1
    %285 = vsyncpa [#allocation4], 1

</llo_original>
